<compile_context>
chip_gen: v7x
topology: tpu7x:2x2x1
jax: 0.10.0
libtpu: 0.0.40
codegen_flags: <defaults>
</compile_context>

<pallas_src>
from functools import partial

import numpy as np
import jax
import jax.numpy as jnp
from jax.experimental import pallas as pl
from jax.experimental.pallas import tpu as pltpu


# -----------------------------------------------------------------------------
# Kernel 1: init_hidden_state + hoisted (time-invariant) attention projection
# -----------------------------------------------------------------------------
def _init_kernel(enc_ref, wh_ref, bh_ref, wc_ref, bc_ref, watt_ref, batt_ref,
                 h_ref, c_ref, att1_ref):
    B, L, E = enc_ref.shape
    D = wh_ref.shape[1]
    enc = enc_ref[...]                                        # (B, L, E)

    mean = jnp.mean(enc, axis=1)                              # (B, E)
    h_ref[...] = jnp.dot(mean, wh_ref[...],
                         preferred_element_type=jnp.float32) + bh_ref[...]
    c_ref[...] = jnp.dot(mean, wc_ref[...],
                         preferred_element_type=jnp.float32) + bc_ref[...]

    # Hoisted encoder_att projection as one dense 2-D MXU matmul.
    enc2d = enc.reshape(B * L, E)
    att1 = jnp.dot(enc2d, watt_ref[...],
                   preferred_element_type=jnp.float32) + batt_ref[...]
    att1_ref[...] = att1.reshape(B, L, D)


def init_state_and_att(enc, params):
    B, L, E = enc.shape
    D = params['w_init_h'].shape[1]
    return pl.pallas_call(
        _init_kernel,
        out_shape=(jax.ShapeDtypeStruct((B, D), jnp.float32),      # h0
                   jax.ShapeDtypeStruct((B, D), jnp.float32),      # c0
                   jax.ShapeDtypeStruct((B, L, D), jnp.float32)),  # att1
    )(enc, params['w_init_h'], params['b_init_h'],
      params['w_init_c'], params['b_init_c'],
      params['w_att'], params['b_att'])


# -----------------------------------------------------------------------------
# Kernel 2: fused decode loop — one grid step per time step t
# -----------------------------------------------------------------------------
def _decode_kernel(decoder_dim,
                   bt_ref,                                    # scalar prefetch (SMEM), (T,)
                   att1_ref, enc_ref, emb_ref, h0_ref, c0_ref,
                   w_fb_ref, b_fb_ref,
                   w_ih_e_ref, w_ih_a_ref, b_ih_ref,
                   w_hh_ref, b_hh_ref,
                   w_fc_ref, b_fc_ref,
                   preds_ref, alpha_ref,
                   h_scr, c_scr):
    D = decoder_dim
    t = pl.program_id(0)
    B = h_scr.shape[0]

    # Initialize the recurrent carry at t == 0 (P3-style accumulator).
    @pl.when(t == 0)
    def _():
        h_scr[...] = h0_ref[...]
        c_scr[...] = c0_ref[...]

    h = h_scr[...]                                            # (B, D)
    c = c_scr[...]                                            # (B, D)
    att1 = att1_ref[...]                                      # (B, L, D) precomputed
    enc = enc_ref[...]                                        # (B, L, E)
    emb = emb_ref[0]                                          # (B, Em)

    # --- Attention: score = bmm(att1, h), softmax over L, weighted sum -------
    score = jnp.sum(att1 * h[:, None, :], axis=-1)            # (B, L)
    m = jnp.max(score, axis=1, keepdims=True)
    e = jnp.exp(score - m)
    alpha = e / jnp.sum(e, axis=1, keepdims=True)             # softmax over L
    awe = jnp.sum(enc * alpha[:, :, None], axis=1)            # (B, E)

    # --- gate = sigmoid(f_beta(h)) --------------------------------------------
    gate = jax.nn.sigmoid(
        jnp.dot(h, w_fb_ref[...], preferred_element_type=jnp.float32)
        + b_fb_ref[...])
    awe = gate * awe

    # --- LSTMCell (PyTorch gate order i, f, g, o); concat replaced by 2 dots --
    gates = (jnp.dot(emb, w_ih_e_ref[...], preferred_element_type=jnp.float32)
             + jnp.dot(awe, w_ih_a_ref[...], preferred_element_type=jnp.float32)
             + jnp.dot(h, w_hh_ref[...], preferred_element_type=jnp.float32)
             + b_ih_ref[...] + b_hh_ref[...])                 # (B, 4D)
    i_g = jax.nn.sigmoid(gates[:, 0 * D:1 * D])
    f_g = jax.nn.sigmoid(gates[:, 1 * D:2 * D])
    g_g = jnp.tanh(gates[:, 2 * D:3 * D])
    o_g = jax.nn.sigmoid(gates[:, 3 * D:4 * D])
    c_new = f_g * c + i_g * g_g
    h_new = o_g * jnp.tanh(c_new)

    # --- fc (dropout is identity in eval) --------------------------------------
    preds = jnp.dot(h_new, w_fc_ref[...],
                    preferred_element_type=jnp.float32) + b_fc_ref[...]

    # --- commit only the first batch_size_t rows (matches `[:bt, t] = ...`) ----
    bt = bt_ref[t]
    row = jax.lax.broadcasted_iota(jnp.int32, (B, 1), 0)
    valid = row < bt
    preds_ref[...] = jnp.where(valid, preds, 0.0)[None]
    alpha_ref[...] = jnp.where(valid, alpha, 0.0)[None]

    # Carry recurrent state for all rows; rows >= bt never reach committed
    # outputs again since decode_lengths are sorted descending.
    h_scr[...] = h_new
    c_scr[...] = c_new


def decode_sequence(att1, enc, emb_tbd, h0, c0, bts, params):
    T, B, Em = emb_tbd.shape
    _, L, E = enc.shape
    D = h0.shape[1]
    V = params['w_fc'].shape[1]

    grid_spec = pltpu.PrefetchScalarGridSpec(
        num_scalar_prefetch=1,
        grid=(T,),
        in_specs=[
            pl.BlockSpec((B, L, D), lambda t, bt: (0, 0, 0)),    # att1 (resident)
            pl.BlockSpec((B, L, E), lambda t, bt: (0, 0, 0)),    # enc  (resident)
            pl.BlockSpec((1, B, Em), lambda t, bt: (t, 0, 0)),   # embeddings[t]
            pl.BlockSpec((B, D), lambda t, bt: (0, 0)),          # h0
            pl.BlockSpec((B, D), lambda t, bt: (0, 0)),          # c0
            pl.BlockSpec((D, E), lambda t, bt: (0, 0)),          # w_fb
            pl.BlockSpec((1, E), lambda t, bt: (0, 0)),          # b_fb
            pl.BlockSpec((Em, 4 * D), lambda t, bt: (0, 0)),     # w_ih_emb
            pl.BlockSpec((E, 4 * D), lambda t, bt: (0, 0)),      # w_ih_awe
            pl.BlockSpec((1, 4 * D), lambda t, bt: (0, 0)),      # b_ih
            pl.BlockSpec((D, 4 * D), lambda t, bt: (0, 0)),      # w_hh
            pl.BlockSpec((1, 4 * D), lambda t, bt: (0, 0)),      # b_hh
            pl.BlockSpec((D, V), lambda t, bt: (0, 0)),          # w_fc
            pl.BlockSpec((1, V), lambda t, bt: (0, 0)),          # b_fc
        ],
        out_specs=(
            pl.BlockSpec((1, B, V), lambda t, bt: (t, 0, 0)),    # predictions[t]
            pl.BlockSpec((1, B, L), lambda t, bt: (t, 0, 0)),    # alphas[t]
        ),
        scratch_shapes=[pltpu.VMEM((B, D), jnp.float32),         # h carry
                        pltpu.VMEM((B, D), jnp.float32)],        # c carry
    )
    return pl.pallas_call(
        partial(_decode_kernel, D),
        grid_spec=grid_spec,
        out_shape=(jax.ShapeDtypeStruct((T, B, V), jnp.float32),
                   jax.ShapeDtypeStruct((T, B, L), jnp.float32)),
        compiler_params=pltpu.CompilerParams(
            dimension_semantics=("arbitrary",)),                 # recurrent in t
    )(bts, att1, enc, emb_tbd, h0, c0,
      params['w_fb'], params['b_fb'],
      params['w_ih_emb'], params['w_ih_awe'], params['b_ih'],
      params['w_hh'], params['b_hh'],
      params['w_fc'], params['b_fc'])


# -----------------------------------------------------------------------------
# Parameter construction (deterministic, synthetic)
# -----------------------------------------------------------------------------
def make_params(key, embed_dim, decoder_dim, vocab_size, encoder_dim):
    ks = jax.random.split(key, 12)
    scale = 0.1
    p = {}
    # Attention.encoder_att: Linear(E -> D), stored transposed as (E, D)
    p['w_att'] = scale * jax.random.normal(ks[0], (encoder_dim, decoder_dim), jnp.float32)
    p['b_att'] = scale * jax.random.normal(ks[1], (1, decoder_dim), jnp.float32)
    # embedding: uniform(-0.1, 0.1)  (matches init_weights)
    p['embedding'] = jax.random.uniform(ks[2], (vocab_size, embed_dim),
                                        jnp.float32, minval=-0.1, maxval=0.1)
    # LSTMCell(embed+E -> D): weight_ih split into [embedding | attention] halves
    # (mathematically identical to concat([emb, awe]) @ w_ih), stored transposed.
    p['w_ih_emb'] = scale * jax.random.normal(ks[3], (embed_dim, 4 * decoder_dim), jnp.float32)
    p['w_ih_awe'] = scale * jax.random.normal(ks[4], (encoder_dim, 4 * decoder_dim), jnp.float32)
    p['b_ih'] = scale * jax.random.normal(ks[5], (1, 4 * decoder_dim), jnp.float32)
    p['w_hh'] = scale * jax.random.normal(ks[6], (decoder_dim, 4 * decoder_dim), jnp.float32)
    p['b_hh'] = scale * jax.random.normal(ks[7], (1, 4 * decoder_dim), jnp.float32)
    # init_h / init_c: Linear(E -> D)
    p['w_init_h'] = scale * jax.random.normal(ks[8], (encoder_dim, decoder_dim), jnp.float32)
    p['b_init_h'] = jnp.zeros((1, decoder_dim), jnp.float32)
    p['w_init_c'] = scale * jax.random.normal(ks[9], (encoder_dim, decoder_dim), jnp.float32)
    p['b_init_c'] = jnp.zeros((1, decoder_dim), jnp.float32)
    # f_beta: Linear(D -> E)
    p['w_fb'] = scale * jax.random.normal(ks[10], (decoder_dim, encoder_dim), jnp.float32)
    p['b_fb'] = scale * jax.random.normal(ks[11], (1, encoder_dim), jnp.float32)
    # fc: Linear(D -> V), bias filled with 0 (matches init_weights)
    kf = jax.random.split(ks[0], 2)
    p['w_fc'] = scale * jax.random.normal(kf[0], (decoder_dim, vocab_size), jnp.float32)
    p['b_fc'] = jnp.zeros((1, vocab_size), jnp.float32)
    return p


# -----------------------------------------------------------------------------
# Forward pass (mirrors DecoderWithAttention.forward)
# -----------------------------------------------------------------------------
def decoder_with_attention_forward(params, encoder_out, encoded_captions, caption_lengths):
    """
    encoder_out:       (B, L, encoder_dim) f32
    encoded_captions:  (B, 1, T_cap) int32
    caption_lengths:   (B, 1) int32  (host-known, drives static control flow)
    """
    B, L, _ = encoder_out.shape

    lengths = np.asarray(caption_lengths).squeeze(1)
    sort_ind = np.argsort(-lengths, kind='stable')            # descending sort
    lengths_sorted = lengths[sort_ind]

    encoder_out = jnp.asarray(encoder_out)[jnp.asarray(sort_ind)]
    captions = jnp.asarray(encoded_captions).squeeze(1)[jnp.asarray(sort_ind)]  # (B, T_cap)

    # embedding lookup (glue, host/XLA gather)
    embeddings = jnp.take(params['embedding'], captions, axis=0)  # (B, T_cap, Em)

    decode_lengths = (lengths_sorted - 1).tolist()
    T = int(max(decode_lengths))
    # batch_size_t per step, scalar-prefetched into SMEM for in-kernel masking.
    bts = jnp.asarray(np.array([sum(l > t for l in decode_lengths) for t in range(T)],
                               dtype=np.int32))

    # init hidden state + hoisted enc @ W_att (Pallas kernel)
    h0, c0, att1 = init_state_and_att(encoder_out, params)

    # time-major embeddings so each grid step reads a lane-dense (1, B, Em) slab
    emb_tbd = jnp.transpose(embeddings[:, :T, :], (1, 0, 2))      # (T, B, Em)

    preds_tbv, alphas_tbl = decode_sequence(att1, encoder_out, emb_tbd,
                                            h0, c0, bts, params)

    predictions = jnp.transpose(preds_tbv, (1, 0, 2))             # (B, T, V)
    alphas = jnp.transpose(alphas_tbl, (1, 0, 2))                 # (B, T, L)
    return predictions, captions, decode_lengths, alphas, jnp.asarray(sort_ind)


# -----------------------------------------------------------------------------
if __name__ == "__main__":
    # small, lane-friendly shapes consistent with the module
    B, L = 8, 8                  # batch, number of encoded image regions
    encoder_dim = 256            # module default
    decoder_dim = 128
    embed_dim = 128
    vocab_size = 128
    T_cap = 8                    # max caption length

    key = jax.random.PRNGKey(0)
    k_enc, k_cap, k_par = jax.random.split(key, 3)

    params = make_params(k_par, embed_dim, decoder_dim, vocab_size, encoder_dim)

    encoder_out = jax.random.normal(k_enc, (B, L, encoder_dim), jnp.float32)
    encoded_captions = jax.random.randint(k_cap, (B, 1, T_cap), 0, vocab_size).astype(jnp.int32)
    caption_lengths = jnp.array([[5], [7], [3], [6], [8], [4], [2], [6]], dtype=jnp.int32)

    preds, caps_sorted, dec_lens, alphas, sort_ind = decoder_with_attention_forward(
        params, encoder_out, encoded_captions, caption_lengths)

    jax.block_until_ready((preds, alphas, caps_sorted, sort_ind))
    T = max(dec_lens)
    assert preds.shape == (B, T, vocab_size)
    assert alphas.shape == (B, T, L)
    print("KERNEL_OK")
</pallas_src>

<mosaic_0001>
module attributes {stable_mosaic.version = 11 : i64} {
  func.func @_init_kernel(%arg0: memref<8x8x256xf32, #tpu.memory_space<vmem>>, %arg1: memref<256x128xf32, #tpu.memory_space<vmem>>, %arg2: memref<1x128xf32, #tpu.memory_space<vmem>>, %arg3: memref<256x128xf32, #tpu.memory_space<vmem>>, %arg4: memref<1x128xf32, #tpu.memory_space<vmem>>, %arg5: memref<256x128xf32, #tpu.memory_space<vmem>>, %arg6: memref<1x128xf32, #tpu.memory_space<vmem>>, %arg7: memref<8x128xf32, #tpu.memory_space<vmem>>, %arg8: memref<8x128xf32, #tpu.memory_space<vmem>>, %arg9: memref<8x8x128xf32, #tpu.memory_space<vmem>>) attributes {dimension_semantics = [], scalar_prefetch = 0 : i64, scratch_operands = 0 : i64, tpu.core_type = #tpu.core_type<tc>} {
    %c0 = arith.constant 0 : index
    %c0_0 = arith.constant 0 : index
    %c0_1 = arith.constant 0 : index
    %0 = vector.load %arg0[%c0, %c0_0, %c0_1] : memref<8x8x256xf32, #tpu.memory_space<vmem>>, vector<8x8x256xf32>
    %cst = arith.constant dense<0.000000e+00> : vector<8x256xf32>
    %1 = vector.multi_reduction <add>, %0, %cst [1] : vector<8x8x256xf32> to vector<8x256xf32>
    %cst_2 = arith.constant 8.000000e+00 : f32
    %2 = vector.broadcast %cst_2 : f32 to vector<8x256xf32>
    %3 = arith.divf %1, %2 : vector<8x256xf32>
    %c0_3 = arith.constant 0 : index
    %c0_4 = arith.constant 0 : index
    %4 = vector.load %arg1[%c0_3, %c0_4] : memref<256x128xf32, #tpu.memory_space<vmem>>, vector<256x128xf32>
    %cst_5 = arith.constant dense<0.000000e+00> : vector<8x128xf32>
    %5 = tpu.matmul %3, %4, %cst_5 {dimension_numbers = #tpu.dot_dimension_numbers<[1], [0], [0], [1], [0, 0, 1, 1], [], []>} : vector<8x256xf32>, vector<256x128xf32>, vector<8x128xf32> -> vector<8x128xf32>
    %c0_6 = arith.constant 0 : index
    %c0_7 = arith.constant 0 : index
    %6 = vector.load %arg2[%c0_6, %c0_7] : memref<1x128xf32, #tpu.memory_space<vmem>>, vector<1x128xf32>
    %7 = vector.broadcast %6 : vector<1x128xf32> to vector<8x128xf32>
    %8 = arith.addf %5, %7 : vector<8x128xf32>
    %c0_8 = arith.constant 0 : index
    %c0_9 = arith.constant 0 : index
    %9 = vector.load %arg7[%c0_8, %c0_9] : memref<8x128xf32, #tpu.memory_space<vmem>>, vector<8x128xf32>
    tpu.vector_store %arg7[%c0_8, %c0_9], %8 {strides = array<i32>} : memref<8x128xf32, #tpu.memory_space<vmem>>, vector<8x128xf32>,
    %c0_10 = arith.constant 0 : index
    %c0_11 = arith.constant 0 : index
    %10 = vector.load %arg3[%c0_10, %c0_11] : memref<256x128xf32, #tpu.memory_space<vmem>>, vector<256x128xf32>
    %cst_12 = arith.constant dense<0.000000e+00> : vector<8x128xf32>
    %11 = tpu.matmul %3, %10, %cst_12 {dimension_numbers = #tpu.dot_dimension_numbers<[1], [0], [0], [1], [0, 0, 1, 1], [], []>} : vector<8x256xf32>, vector<256x128xf32>, vector<8x128xf32> -> vector<8x128xf32>
    %c0_13 = arith.constant 0 : index
    %c0_14 = arith.constant 0 : index
    %12 = vector.load %arg4[%c0_13, %c0_14] : memref<1x128xf32, #tpu.memory_space<vmem>>, vector<1x128xf32>
    %13 = vector.broadcast %12 : vector<1x128xf32> to vector<8x128xf32>
    %14 = arith.addf %11, %13 : vector<8x128xf32>
    %c0_15 = arith.constant 0 : index
    %c0_16 = arith.constant 0 : index
    %15 = vector.load %arg8[%c0_15, %c0_16] : memref<8x128xf32, #tpu.memory_space<vmem>>, vector<8x128xf32>
    tpu.vector_store %arg8[%c0_15, %c0_16], %14 {strides = array<i32>} : memref<8x128xf32, #tpu.memory_space<vmem>>, vector<8x128xf32>,
    %16 = vector.shape_cast %0 : vector<8x8x256xf32> to vector<64x256xf32>
    %c0_17 = arith.constant 0 : index
    %c0_18 = arith.constant 0 : index
    %17 = vector.load %arg5[%c0_17, %c0_18] : memref<256x128xf32, #tpu.memory_space<vmem>>, vector<256x128xf32>
    %cst_19 = arith.constant dense<0.000000e+00> : vector<64x128xf32>
    %18 = tpu.matmul %16, %17, %cst_19 {dimension_numbers = #tpu.dot_dimension_numbers<[1], [0], [0], [1], [0, 0, 1, 1], [], []>} : vector<64x256xf32>, vector<256x128xf32>, vector<64x128xf32> -> vector<64x128xf32>
    %c0_20 = arith.constant 0 : index
    %c0_21 = arith.constant 0 : index
    %19 = vector.load %arg6[%c0_20, %c0_21] : memref<1x128xf32, #tpu.memory_space<vmem>>, vector<1x128xf32>
    %20 = vector.broadcast %19 : vector<1x128xf32> to vector<64x128xf32>
    %21 = arith.addf %18, %20 : vector<64x128xf32>
    %22 = vector.shape_cast %21 : vector<64x128xf32> to vector<8x8x128xf32>
    %c0_22 = arith.constant 0 : index
    %c0_23 = arith.constant 0 : index
    %c0_24 = arith.constant 0 : index
    %23 = vector.load %arg9[%c0_22, %c0_23, %c0_24] : memref<8x8x128xf32, #tpu.memory_space<vmem>>, vector<8x8x128xf32>
    tpu.vector_store %arg9[%c0_22, %c0_23, %c0_24], %22 {strides = array<i32>} : memref<8x8x128xf32, #tpu.memory_space<vmem>>, vector<8x8x128xf32>,
    return
  }
}

</mosaic_0001>

<llo_original>
// kernel: tpu_custom_call.1
$region0: #{tpu_custom_call.1}
  #allocation0 [shape = 'u32[]', space=smem, size = 0x4, offset = 0x4, fixed_abs, tag = 'smem constant byte address 0x4 - core index']
  #allocation1 [shape = 'u32[144,128]{1,0:T(1,128)}', space=vmem, size = 0x12000, scoped, tag = 'internal scratch']
  %s0 = inlined_call_operand.hbm [shape: f32[8,8,256], index: 0, kind: input, shape index: {}]
  %s1 = inlined_call_operand.hbm [shape: f32[256,128], index: 1, kind: input, shape index: {}]
  %s2 = inlined_call_operand.vmem [shape: f32[1,128], index: 2, kind: input, shape index: {}]
  %s3 = inlined_call_operand.hbm [shape: f32[256,128], index: 3, kind: input, shape index: {}]
  %s4 = inlined_call_operand.vmem [shape: f32[1,128], index: 4, kind: input, shape index: {}]
  %s5 = inlined_call_operand.hbm [shape: f32[256,128], index: 5, kind: input, shape index: {}]
  %s6 = inlined_call_operand.vmem [shape: f32[1,128], index: 6, kind: input, shape index: {}]
  %s7 = inlined_call_operand.hbm [shape: f32[8,128], index: 7, kind: output, shape index: {0}]
  %s8 = inlined_call_operand.hbm [shape: f32[8,128], index: 8, kind: output, shape index: {1}]
  %s9 = inlined_call_operand.hbm [shape: f32[8,8,128], index: 9, kind: output, shape index: {2}]
  %10 = xla_tuple %s7, %s8, %s9
  %s11 = sld [smem:[#allocation0]]
  $region70: #{tpu_custom_call.1} parent=0
    _
  %s13 = ssub.s32 1, %s11
  %s14 = scalar_select 0, %s13, %s11
  $region1: #{tpu_custom_call.1} parent=0
    #allocation2 [shape = 'u8[65536]{0}', space=vmem, size = 0x10000, scoped, tag = 'input window, operand 0, single buffered']
    #allocation3 [shape = 's32[1]{0}', space=sflag, size = 0x4, scoped, tag = 'scoped memory for tpu_custom_call.1']
    #allocation4 [shape = 's32[1]{0}', space=sflag, size = 0x4, scoped, tag = 'scoped memory for tpu_custom_call.1']
    #allocation5 [shape = 'u8[131072]{0}', space=vmem, size = 0x20000, scoped, tag = 'input window, operand 1, single buffered']
    #allocation6 [shape = 's32[1]{0}', space=sflag, size = 0x4, scoped, tag = 'scoped memory for tpu_custom_call.1']
    #allocation7 [shape = 'u8[131072]{0}', space=vmem, size = 0x20000, scoped, tag = 'input window, operand 3, single buffered']
    #allocation8 [shape = 'u8[131072]{0}', space=vmem, size = 0x20000, scoped, tag = 'input window, operand 5, single buffered']
    #allocation9 [shape = 's32[1]{0}', space=sflag, size = 0x4, scoped, tag = 'scoped memory for tpu_custom_call.1']
    #allocation10 [shape = 'u8[4096]{0}', space=vmem, size = 0x1000, scoped, tag = 'output window, operand 0, single buffered']
    #allocation11 [shape = 'u8[4096]{0}', space=vmem, size = 0x1000, scoped, tag = 'output window, operand 1, single buffered']
    #allocation12 [shape = 's32[1]{0}', space=sflag, size = 0x4, scoped, tag = 'scoped memory for tpu_custom_call.1']
    #allocation13 [shape = 'u8[32768]{0}', space=vmem, size = 0x8000, scoped, tag = 'output window, operand 2, single buffered']
    %15 = vsyncpa [#allocation3], 0
    %16 = vsyncpa [#allocation6], 0
    %17 = vsyncpa [#allocation9], 0
    %18 = vsyncpa [#allocation4], 0
    %19 = vsyncpa [#allocation12], 0
    // Predicated region
    $region2: #{tpu_custom_call.1} parent=1 // pred_check
      _
    $region3: #{tpu_custom_call.1} parent=1 // pred_check_branch
      %21 = sbr.rel (0) target = $region5
    $region4: #{tpu_custom_call.1} parent=1 // pred_region
      %s23 = ssub.s32 2048, 2048
      %24 = vsyncadd [#allocation3], %s23
      %s25 = sshll.u32 [#allocation2], 4
      %s26 = int_to_ptr.vmem [resolvable:$true] %s25
      %31 = dma.hbm_to_vmem [thread:$0]  %s0, 2048, %s26, [#allocation3], 256, 256, 16
    $region5: #{tpu_custom_call.1} parent=1 // pred_fallthru
      _
    // Predicated region
    $region6: #{tpu_custom_call.1} parent=1 // pred_check
      _
    $region7: #{tpu_custom_call.1} parent=1 // pred_check_branch
      %33 = sbr.rel (0) target = $region9
    $region8: #{tpu_custom_call.1} parent=1 // pred_region
      %s35 = ssub.s32 4096, 4096
      %36 = vsyncadd [#allocation6], %s35
      %s37 = sshll.u32 [#allocation5], 4
      %s38 = int_to_ptr.vmem [resolvable:$true] %s37
      %43 = dma.hbm_to_vmem [thread:$0]  %s1, 4096, %s38, [#allocation6], 128, 128, 8
    $region9: #{tpu_custom_call.1} parent=1 // pred_fallthru
      _
    // Predicated region
    $region10: #{tpu_custom_call.1} parent=1 // pred_check
      _
    $region11: #{tpu_custom_call.1} parent=1 // pred_check_branch
      %45 = sbr.rel (0) target = $region13
    $region12: #{tpu_custom_call.1} parent=1 // pred_region
      _
    $region13: #{tpu_custom_call.1} parent=1 // pred_fallthru
      _
    // Predicated region
    $region14: #{tpu_custom_call.1} parent=1 // pred_check
      _
    $region15: #{tpu_custom_call.1} parent=1 // pred_check_branch
      %47 = sbr.rel (0) target = $region17
    $region16: #{tpu_custom_call.1} parent=1 // pred_region
      %s49 = ssub.s32 4096, 4096
      %50 = vsyncadd [#allocation6], %s49
      %s51 = sshll.u32 [#allocation7], 4
      %s52 = int_to_ptr.vmem [resolvable:$true] %s51
      %57 = dma.hbm_to_vmem [thread:$0]  %s3, 4096, %s52, [#allocation6], 128, 128, 8
    $region17: #{tpu_custom_call.1} parent=1 // pred_fallthru
      _
    // Predicated region
    $region18: #{tpu_custom_call.1} parent=1 // pred_check
      _
    $region19: #{tpu_custom_call.1} parent=1 // pred_check_branch
      %59 = sbr.rel (0) target = $region21
    $region20: #{tpu_custom_call.1} parent=1 // pred_region
      _
    $region21: #{tpu_custom_call.1} parent=1 // pred_fallthru
      _
    // Predicated region
    $region22: #{tpu_custom_call.1} parent=1 // pred_check
      _
    $region23: #{tpu_custom_call.1} parent=1 // pred_check_branch
      %61 = sbr.rel (0) target = $region25
    $region24: #{tpu_custom_call.1} parent=1 // pred_region
      %s63 = ssub.s32 4096, 4096
      %64 = vsyncadd [#allocation9], %s63
      %s65 = sshll.u32 [#allocation8], 4
      %s66 = int_to_ptr.vmem [resolvable:$true] %s65
      %71 = dma.hbm_to_vmem [thread:$0]  %s5, 4096, %s66, [#allocation9], 128, 128, 8
    $region25: #{tpu_custom_call.1} parent=1 // pred_fallthru
      _
    // Predicated region
    $region26: #{tpu_custom_call.1} parent=1 // pred_check
      _
    $region27: #{tpu_custom_call.1} parent=1 // pred_check_branch
      %73 = sbr.rel (0) target = $region29
    $region28: #{tpu_custom_call.1} parent=1 // pred_region
      _
    $region29: #{tpu_custom_call.1} parent=1 // pred_fallthru
      _
    // Predicated region
    $region30: #{tpu_custom_call.1} parent=1 // pred_check
      _
    $region31: #{tpu_custom_call.1} parent=1 // pred_check_branch
      %75 = sbr.rel (0) target = $region33
    $region32: #{tpu_custom_call.1} parent=1 // pred_region
      %76 = dma.done [#allocation3], 2048
    $region33: #{tpu_custom_call.1} parent=1 // pred_fallthru
      _
    // Predicated region
    $region34: #{tpu_custom_call.1} parent=1 // pred_check
      _
    $region35: #{tpu_custom_call.1} parent=1 // pred_check_branch
      %78 = sbr.rel (0) target = $region37
    $region36: #{tpu_custom_call.1} parent=1 // pred_region
      %79 = dma.done [#allocation6], 4096
    $region37: #{tpu_custom_call.1} parent=1 // pred_fallthru
      _
    // Predicated region
    $region38: #{tpu_custom_call.1} parent=1 // pred_check
      _
    $region39: #{tpu_custom_call.1} parent=1 // pred_check_branch
      %81 = sbr.rel (0) target = $region41
    $region40: #{tpu_custom_call.1} parent=1 // pred_region
      %82 = dma.done [#allocation6], 4096
    $region41: #{tpu_custom_call.1} parent=1 // pred_fallthru
      _
    // Predicated region
    $region42: #{tpu_custom_call.1} parent=1 // pred_check
      _
    $region43: #{tpu_custom_call.1} parent=1 // pred_check_branch
      %84 = sbr.rel (0) target = $region45
    $region44: #{tpu_custom_call.1} parent=1 // pred_region
      %85 = dma.done [#allocation9], 4096
    $region45: #{tpu_custom_call.1} parent=1 // pred_fallthru
      _
    %v86 = vld [vmem:[#allocation2] sm:$0xff]
    %v87 = vld [vmem:[#allocation2 + $0x8] sm:$0xff]
    %v88 = vld [vmem:[#allocation2 + $0x10] sm:$0xff]
    %v89 = vld [vmem:[#allocation2 + $0x18] sm:$0xff]
    %v90 = vld [vmem:[#allocation2 + $0x20] sm:$0xff]
    %v91 = vld [vmem:[#allocation2 + $0x28] sm:$0xff]
    %v92 = vld [vmem:[#allocation2 + $0x30] sm:$0xff]
    %v93 = vld [vmem:[#allocation2 + $0x38] sm:$0xff]
    %v94 = vld [vmem:[#allocation2 + $0x40] sm:$0xff]
    %v95 = vld [vmem:[#allocation2 + $0x48] sm:$0xff]
    %v96 = vld [vmem:[#allocation2 + $0x50] sm:$0xff]
    %v97 = vld [vmem:[#allocation2 + $0x58] sm:$0xff]
    %v98 = vld [vmem:[#allocation2 + $0x60] sm:$0xff]
    %v99 = vld [vmem:[#allocation2 + $0x68] sm:$0xff]
    %v100 = vld [vmem:[#allocation2 + $0x70] sm:$0xff]
    %v101 = vld [vmem:[#allocation2 + $0x78] sm:$0xff]
    %v102 = vrot.slane %v86, 4
    %v103 = vadd.f32 %v86, %v102
    %v104 = vrot.slane %v103, 2
    %v105 = vadd.f32 %v103, %v104
    %v106 = vrot.slane %v105, 1
    %v107 = vadd.f32 %v105, %v106
    %v108 = vrot.slane %v87, 4
    %v109 = vadd.f32 %v87, %v108
    %v110 = vrot.slane %v109, 2
    %v111 = vadd.f32 %v109, %v110
    %v112 = vrot.slane %v111, 1
    %v113 = vadd.f32 %v111, %v112
    %v114 = vrot.slane %v88, 4
    %v115 = vadd.f32 %v88, %v114
    %v116 = vrot.slane %v115, 2
    %v117 = vadd.f32 %v115, %v116
    %v118 = vrot.slane %v117, 1
    %v119 = vadd.f32 %v117, %v118
    %v120 = vrot.slane %v89, 4
    %v121 = vadd.f32 %v89, %v120
    %v122 = vrot.slane %v121, 2
    %v123 = vadd.f32 %v121, %v122
    %v124 = vrot.slane %v123, 1
    %v125 = vadd.f32 %v123, %v124
    %v126 = vrot.slane %v90, 4
    %v127 = vadd.f32 %v90, %v126
    %v128 = vrot.slane %v127, 2
    %v129 = vadd.f32 %v127, %v128
    %v130 = vrot.slane %v129, 1
    %v131 = vadd.f32 %v129, %v130
    %v132 = vrot.slane %v91, 4
    %v133 = vadd.f32 %v91, %v132
    %v134 = vrot.slane %v133, 2
    %v135 = vadd.f32 %v133, %v134
    %v136 = vrot.slane %v135, 1
    %v137 = vadd.f32 %v135, %v136
    %v138 = vrot.slane %v92, 4
    %v139 = vadd.f32 %v92, %v138
    %v140 = vrot.slane %v139, 2
    %v141 = vadd.f32 %v139, %v140
    %v142 = vrot.slane %v141, 1
    %v143 = vadd.f32 %v141, %v142
    %v144 = vrot.slane %v93, 4
    %v145 = vadd.f32 %v93, %v144
    %v146 = vrot.slane %v145, 2
    %v147 = vadd.f32 %v145, %v146
    %v148 = vrot.slane %v147, 1
    %v149 = vadd.f32 %v147, %v148
    %v150 = vrot.slane %v94, 4
    %v151 = vadd.f32 %v94, %v150
    %v152 = vrot.slane %v151, 2
    %v153 = vadd.f32 %v151, %v152
    %v154 = vrot.slane %v153, 1
    %v155 = vadd.f32 %v153, %v154
    %v156 = vrot.slane %v95, 4
    %v157 = vadd.f32 %v95, %v156
    %v158 = vrot.slane %v157, 2
    %v159 = vadd.f32 %v157, %v158
    %v160 = vrot.slane %v159, 1
    %v161 = vadd.f32 %v159, %v160
    %v162 = vrot.slane %v96, 4
    %v163 = vadd.f32 %v96, %v162
    %v164 = vrot.slane %v163, 2
    %v165 = vadd.f32 %v163, %v164
    %v166 = vrot.slane %v165, 1
    %v167 = vadd.f32 %v165, %v166
    %v168 = vrot.slane %v97, 4
    %v169 = vadd.f32 %v97, %v168
    %v170 = vrot.slane %v169, 2
    %v171 = vadd.f32 %v169, %v170
    %v172 = vrot.slane %v171, 1
    %v173 = vadd.f32 %v171, %v172
    %v174 = vrot.slane %v98, 4
    %v175 = vadd.f32 %v98, %v174
    %v176 = vrot.slane %v175, 2
    %v177 = vadd.f32 %v175, %v176
    %v178 = vrot.slane %v177, 1
    %v179 = vadd.f32 %v177, %v178
    %v180 = vrot.slane %v99, 4
    %v181 = vadd.f32 %v99, %v180
    %v182 = vrot.slane %v181, 2
    %v183 = vadd.f32 %v181, %v182
    %v184 = vrot.slane %v183, 1
    %v185 = vadd.f32 %v183, %v184
    %v186 = vrot.slane %v100, 4
    %v187 = vadd.f32 %v100, %v186
    %v188 = vrot.slane %v187, 2
    %v189 = vadd.f32 %v187, %v188
    %v190 = vrot.slane %v189, 1
    %v191 = vadd.f32 %v189, %v190
    %v192 = vrot.slane %v101, 4
    %v193 = vadd.f32 %v101, %v192
    %v194 = vrot.slane %v193, 2
    %v195 = vadd.f32 %v193, %v194
    %v196 = vrot.slane %v195, 1
    %v197 = vadd.f32 %v195, %v196
    %v198 = vrcp.pop 8.0
    %v199 = vmul.f32 %v107, %v198
    %v200 = vmul.f32 %v113, %v198
    %v201 = vmul.f32 %v119, %v198
    %v202 = vmul.f32 %v125, %v198
    %v203 = vmul.f32 %v131, %v198
    %v204 = vmul.f32 %v137, %v198
    %v205 = vmul.f32 %v143, %v198
    %v206 = vmul.f32 %v149, %v198
    %v207 = vmul.f32 %v155, %v198
    %v208 = vmul.f32 %v161, %v198
    %v209 = vmul.f32 %v167, %v198
    %v210 = vmul.f32 %v173, %v198
    %v211 = vmul.f32 %v179, %v198
    %v212 = vmul.f32 %v185, %v198
    %v213 = vmul.f32 %v191, %v198
    %v214 = vmul.f32 %v197, %v198
    %v215 = vld [vmem:[#allocation5] sm:$0xff]
    %v216 = vld [vmem:[#allocation5 + $0x8] sm:$0xff]
    %v217 = vld [vmem:[#allocation5 + $0x10] sm:$0xff]
    %v218 = vld [vmem:[#allocation5 + $0x18] sm:$0xff]
    %v219 = vld [vmem:[#allocation5 + $0x20] sm:$0xff]
    %v220 = vld [vmem:[#allocation5 + $0x28] sm:$0xff]
    %v221 = vld [vmem:[#allocation5 + $0x30] sm:$0xff]
    %v222 = vld [vmem:[#allocation5 + $0x38] sm:$0xff]
    %v223 = vld [vmem:[#allocation5 + $0x40] sm:$0xff]
    %v224 = vld [vmem:[#allocation5 + $0x48] sm:$0xff]
    %v225 = vld [vmem:[#allocation5 + $0x50] sm:$0xff]
    %v226 = vld [vmem:[#allocation5 + $0x58] sm:$0xff]
    %v227 = vld [vmem:[#allocation5 + $0x60] sm:$0xff]
    %v228 = vld [vmem:[#allocation5 + $0x68] sm:$0xff]
    %v229 = vld [vmem:[#allocation5 + $0x70] sm:$0xff]
    %v230 = vld [vmem:[#allocation5 + $0x78] sm:$0xff]
    %v231 = vld [vmem:[#allocation5 + $0x80] sm:$0xff]
    %v232 = vld [vmem:[#allocation5 + $0x88] sm:$0xff]
    %v233 = vld [vmem:[#allocation5 + $0x90] sm:$0xff]
    %v234 = vld [vmem:[#allocation5 + $0x98] sm:$0xff]
    %v235 = vld [vmem:[#allocation5 + $0xa0] sm:$0xff]
    %v236 = vld [vmem:[#allocation5 + $0xa8] sm:$0xff]
    %v237 = vld [vmem:[#allocation5 + $0xb0] sm:$0xff]
    %v238 = vld [vmem:[#allocation5 + $0xb8] sm:$0xff]
    %v239 = vld [vmem:[#allocation5 + $0xc0] sm:$0xff]
    %v240 = vld [vmem:[#allocation5 + $0xc8] sm:$0xff]
    %v241 = vld [vmem:[#allocation5 + $0xd0] sm:$0xff]
    %v242 = vld [vmem:[#allocation5 + $0xd8] sm:$0xff]
    %v243 = vld [vmem:[#allocation5 + $0xe0] sm:$0xff]
    %v244 = vld [vmem:[#allocation5 + $0xe8] sm:$0xff]
    %v245 = vld [vmem:[#allocation5 + $0xf0] sm:$0xff]
    %v246 = vld [vmem:[#allocation5 + $0xf8] sm:$0xff]
    %v247 = vld [vmem:[%s2] sm:$0x1]
    %v249 = vlaneseq
    %v250 = vshrl.u32 %v249, 7
    %v251 = vsub.s32 0, %v250
    %v252 = vrot.slane %v247, %v251
    %vm270 = vcmask 1041409
    %v271 = vsel %vm270, %v201, %v199
    %vm272 = vcmask 1042434
    %v273 = vsel %vm272, %v203, %v271
    %vm274 = vcmask 1043459
    %v275 = vsel %vm274, %v205, %v273
    %vm276 = vcmask 1044484
    %v277 = vsel %vm276, %v207, %v275
    %vm278 = vcmask 1045509
    %v279 = vsel %vm278, %v209, %v277
    %vm280 = vcmask 1046534
    %v281 = vsel %vm280, %v211, %v279
    %vm282 = vcmask 1047559
    %v283 = vsel %vm282, %v213, %v281
    %v284 = vsel %vm270, %v202, %v200
    %v285 = vsel %vm272, %v204, %v284
    %v286 = vsel %vm274, %v206, %v285
    %v287 = vsel %vm276, %v208, %v286
    %v288 = vsel %vm278, %v210, %v287
    %v289 = vsel %vm280, %v212, %v288
    %v290 = vsel %vm282, %v214, %v289
    %293 = vmatprep.subr.mxu0 0.0
    %294 = vmatpush1.msra.mxu0 %v215
    %295 = vmatprep.subr.mxu0 0.0
    %296 = vmatpush1.msra.mxu0 %v216
    %297 = vmatprep.subr.mxu0 0.0
    %298 = vmatpush1.msra.mxu0 %v217
    %299 = vmatprep.subr.mxu0 0.0
    %300 = vmatpush1.msra.mxu0 %v218
    %301 = vmatprep.subr.mxu0 0.0
    %302 = vmatpush1.msra.mxu0 %v219
    %303 = vmatprep.subr.mxu0 0.0
    %304 = vmatpush1.msra.mxu0 %v220
    %305 = vmatprep.subr.mxu0 0.0
    %306 = vmatpush1.msra.mxu0 %v221
    %307 = vmatprep.subr.mxu0 0.0
    %308 = vmatpush1.msra.mxu0 %v222
    %309 = vmatprep.subr.mxu0 0.0
    %310 = vmatpush1.msra.mxu0 %v223
    %311 = vmatprep.subr.mxu0 0.0
    %312 = vmatpush1.msra.mxu0 %v224
    %313 = vmatprep.subr.mxu0 0.0
    %314 = vmatpush1.msra.mxu0 %v225
    %315 = vmatprep.subr.mxu0 0.0
    %316 = vmatpush1.msra.mxu0 %v226
    %317 = vmatprep.subr.mxu0 0.0
    %318 = vmatpush1.msra.mxu0 %v227
    %319 = vmatprep.subr.mxu0 0.0
    %320 = vmatpush1.msra.mxu0 %v228
    %321 = vmatprep.subr.mxu0 0.0
    %322 = vmatpush1.msra.mxu0 %v229
    %323 = vmatprep.subr.mxu0 0.0
    %324 = vmatpush1.msra.mxu0 %v230
    %325 = vmatprep.subr.mxu0 0.0
    %326 = vmatpush1.msra.mxu0 %v231
    %327 = vmatprep.subr.mxu0 0.0
    %328 = vmatpush1.msra.mxu0 %v232
    %329 = vmatprep.subr.mxu0 0.0
    %330 = vmatpush1.msra.mxu0 %v233
    %331 = vmatprep.subr.mxu0 0.0
    %332 = vmatpush1.msra.mxu0 %v234
    %333 = vmatprep.subr.mxu0 0.0
    %334 = vmatpush1.msra.mxu0 %v235
    %335 = vmatprep.subr.mxu0 0.0
    %336 = vmatpush1.msra.mxu0 %v236
    %337 = vmatprep.subr.mxu0 0.0
    %338 = vmatpush1.msra.mxu0 %v237
    %339 = vmatprep.subr.mxu0 0.0
    %340 = vmatpush1.msra.mxu0 %v238
    %341 = vmatprep.subr.mxu0 0.0
    %342 = vmatpush1.msra.mxu0 %v239
    %343 = vmatprep.subr.mxu0 0.0
    %344 = vmatpush1.msra.mxu0 %v240
    %345 = vmatprep.subr.mxu0 0.0
    %346 = vmatpush1.msra.mxu0 %v241
    %347 = vmatprep.subr.mxu0 0.0
    %348 = vmatpush1.msra.mxu0 %v242
    %349 = vmatprep.subr.mxu0 0.0
    %350 = vmatpush1.msra.mxu0 %v243
    %351 = vmatprep.subr.mxu0 0.0
    %352 = vmatpush1.msra.mxu0 %v244
    %353 = vmatprep.subr.mxu0 0.0
    %354 = vmatpush1.msra.mxu0 %v245
    %355 = vmatprep.subr.mxu0 0.0
    %356 = vmatpush1.msra.mxu0 %v246
    %357 = vmatprep.mubr.f32.mxu0 %v290
    %358 = vmatmul.mubr.f32.gmra.mrb[0].mxu0 %v283
    %v359 = vpop.f32.mrb[0].mxu0
    %v360 = vadd.f32 %v252, %v359
    %v361 = vpop.f32.mrb[0].mxu0
    %362 = vdwg.mxu0
    %363 = vst [vmem:[#allocation10] sm:$0xff] %v360
    %v364 = vld [vmem:[#allocation7] sm:$0xff]
    %v365 = vld [vmem:[#allocation7 + $0x8] sm:$0xff]
    %v366 = vld [vmem:[#allocation7 + $0x10] sm:$0xff]
    %v367 = vld [vmem:[#allocation7 + $0x18] sm:$0xff]
    %v368 = vld [vmem:[#allocation7 + $0x20] sm:$0xff]
    %v369 = vld [vmem:[#allocation7 + $0x28] sm:$0xff]
    %v370 = vld [vmem:[#allocation7 + $0x30] sm:$0xff]
    %v371 = vld [vmem:[#allocation7 + $0x38] sm:$0xff]
    %v372 = vld [vmem:[#allocation7 + $0x40] sm:$0xff]
    %v373 = vld [vmem:[#allocation7 + $0x48] sm:$0xff]
    %v374 = vld [vmem:[#allocation7 + $0x50] sm:$0xff]
    %v375 = vld [vmem:[#allocation7 + $0x58] sm:$0xff]
    %v376 = vld [vmem:[#allocation7 + $0x60] sm:$0xff]
    %v377 = vld [vmem:[#allocation7 + $0x68] sm:$0xff]
    %v378 = vld [vmem:[#allocation7 + $0x70] sm:$0xff]
    %v379 = vld [vmem:[#allocation7 + $0x78] sm:$0xff]
    %v380 = vld [vmem:[#allocation7 + $0x80] sm:$0xff]
    %v381 = vld [vmem:[#allocation7 + $0x88] sm:$0xff]
    %v382 = vld [vmem:[#allocation7 + $0x90] sm:$0xff]
    %v383 = vld [vmem:[#allocation7 + $0x98] sm:$0xff]
    %v384 = vld [vmem:[#allocation7 + $0xa0] sm:$0xff]
    %v385 = vld [vmem:[#allocation7 + $0xa8] sm:$0xff]
    %v386 = vld [vmem:[#allocation7 + $0xb0] sm:$0xff]
    %v387 = vld [vmem:[#allocation7 + $0xb8] sm:$0xff]
    %v388 = vld [vmem:[#allocation7 + $0xc0] sm:$0xff]
    %v389 = vld [vmem:[#allocation7 + $0xc8] sm:$0xff]
    %v390 = vld [vmem:[#allocation7 + $0xd0] sm:$0xff]
    %v391 = vld [vmem:[#allocation7 + $0xd8] sm:$0xff]
    %v392 = vld [vmem:[#allocation7 + $0xe0] sm:$0xff]
    %v393 = vld [vmem:[#allocation7 + $0xe8] sm:$0xff]
    %v394 = vld [vmem:[#allocation7 + $0xf0] sm:$0xff]
    %v395 = vld [vmem:[#allocation7 + $0xf8] sm:$0xff]
    %v396 = vld [vmem:[%s4] sm:$0x1]
    %v398 = vlaneseq
    %v399 = vshrl.u32 %v398, 7
    %v400 = vsub.s32 0, %v399
    %v401 = vrot.slane %v396, %v400
    %403 = vmatprep.subr.mxu0 0.0
    %404 = vmatpush1.msra.mxu0 %v364
    %405 = vmatprep.subr.mxu0 0.0
    %406 = vmatpush1.msra.mxu0 %v365
    %407 = vmatprep.subr.mxu0 0.0
    %408 = vmatpush1.msra.mxu0 %v366
    %409 = vmatprep.subr.mxu0 0.0
    %410 = vmatpush1.msra.mxu0 %v367
    %411 = vmatprep.subr.mxu0 0.0
    %412 = vmatpush1.msra.mxu0 %v368
    %413 = vmatprep.subr.mxu0 0.0
    %414 = vmatpush1.msra.mxu0 %v369
    %415 = vmatprep.subr.mxu0 0.0
    %416 = vmatpush1.msra.mxu0 %v370
    %417 = vmatprep.subr.mxu0 0.0
    %418 = vmatpush1.msra.mxu0 %v371
    %419 = vmatprep.subr.mxu0 0.0
    %420 = vmatpush1.msra.mxu0 %v372
    %421 = vmatprep.subr.mxu0 0.0
    %422 = vmatpush1.msra.mxu0 %v373
    %423 = vmatprep.subr.mxu0 0.0
    %424 = vmatpush1.msra.mxu0 %v374
    %425 = vmatprep.subr.mxu0 0.0
    %426 = vmatpush1.msra.mxu0 %v375
    %427 = vmatprep.subr.mxu0 0.0
    %428 = vmatpush1.msra.mxu0 %v376
    %429 = vmatprep.subr.mxu0 0.0
    %430 = vmatpush1.msra.mxu0 %v377
    %431 = vmatprep.subr.mxu0 0.0
    %432 = vmatpush1.msra.mxu0 %v378
    %433 = vmatprep.subr.mxu0 0.0
    %434 = vmatpush1.msra.mxu0 %v379
    %435 = vmatprep.subr.mxu0 0.0
    %436 = vmatpush1.msra.mxu0 %v380
    %437 = vmatprep.subr.mxu0 0.0
    %438 = vmatpush1.msra.mxu0 %v381
    %439 = vmatprep.subr.mxu0 0.0
    %440 = vmatpush1.msra.mxu0 %v382
    %441 = vmatprep.subr.mxu0 0.0
    %442 = vmatpush1.msra.mxu0 %v383
    %443 = vmatprep.subr.mxu0 0.0
    %444 = vmatpush1.msra.mxu0 %v384
    %445 = vmatprep.subr.mxu0 0.0
    %446 = vmatpush1.msra.mxu0 %v385
    %447 = vmatprep.subr.mxu0 0.0
    %448 = vmatpush1.msra.mxu0 %v386
    %449 = vmatprep.subr.mxu0 0.0
    %450 = vmatpush1.msra.mxu0 %v387
    %451 = vmatprep.subr.mxu0 0.0
    %452 = vmatpush1.msra.mxu0 %v388
    %453 = vmatprep.subr.mxu0 0.0
    %454 = vmatpush1.msra.mxu0 %v389
    %455 = vmatprep.subr.mxu0 0.0
    %456 = vmatpush1.msra.mxu0 %v390
    %457 = vmatprep.subr.mxu0 0.0
    %458 = vmatpush1.msra.mxu0 %v391
    %459 = vmatprep.subr.mxu0 0.0
    %460 = vmatpush1.msra.mxu0 %v392
    %461 = vmatprep.subr.mxu0 0.0
    %462 = vmatpush1.msra.mxu0 %v393
    %463 = vmatprep.subr.mxu0 0.0
    %464 = vmatpush1.msra.mxu0 %v394
    %465 = vmatprep.subr.mxu0 0.0
    %466 = vmatpush1.msra.mxu0 %v395
    %467 = vmatprep.mubr.f32.mxu0 %v290
    %468 = vmatmul.mubr.f32.gmra.mrb[0].mxu0 %v283
    %v469 = vpop.f32.mrb[0].mxu0
    %v470 = vadd.f32 %v401, %v469
    %v471 = vpop.f32.mrb[0].mxu0
    %472 = vdwg.mxu0
    %473 = vst [vmem:[#allocation11] sm:$0xff] %v470
    %v474 = vld [vmem:[#allocation8] sm:$0xff]
    %v475 = vld [vmem:[#allocation8 + $0x8] sm:$0xff]
    %v476 = vld [vmem:[#allocation8 + $0x10] sm:$0xff]
    %v477 = vld [vmem:[#allocation8 + $0x18] sm:$0xff]
    %v478 = vld [vmem:[#allocation8 + $0x20] sm:$0xff]
    %v479 = vld [vmem:[#allocation8 + $0x28] sm:$0xff]
    %v480 = vld [vmem:[#allocation8 + $0x30] sm:$0xff]
    %v481 = vld [vmem:[#allocation8 + $0x38] sm:$0xff]
    %v482 = vld [vmem:[#allocation8 + $0x40] sm:$0xff]
    %v483 = vld [vmem:[#allocation8 + $0x48] sm:$0xff]
    %v484 = vld [vmem:[#allocation8 + $0x50] sm:$0xff]
    %v485 = vld [vmem:[#allocation8 + $0x58] sm:$0xff]
    %v486 = vld [vmem:[#allocation8 + $0x60] sm:$0xff]
    %v487 = vld [vmem:[#allocation8 + $0x68] sm:$0xff]
    %v488 = vld [vmem:[#allocation8 + $0x70] sm:$0xff]
    %v489 = vld [vmem:[#allocation8 + $0x78] sm:$0xff]
    %v490 = vld [vmem:[#allocation8 + $0x80] sm:$0xff]
    %v491 = vld [vmem:[#allocation8 + $0x88] sm:$0xff]
    %v492 = vld [vmem:[#allocation8 + $0x90] sm:$0xff]
    %v493 = vld [vmem:[#allocation8 + $0x98] sm:$0xff]
    %v494 = vld [vmem:[#allocation8 + $0xa0] sm:$0xff]
    %v495 = vld [vmem:[#allocation8 + $0xa8] sm:$0xff]
    %v496 = vld [vmem:[#allocation8 + $0xb0] sm:$0xff]
    %v497 = vld [vmem:[#allocation8 + $0xb8] sm:$0xff]
    %v498 = vld [vmem:[#allocation8 + $0xc0] sm:$0xff]
    %v499 = vld [vmem:[#allocation8 + $0xc8] sm:$0xff]
    %v500 = vld [vmem:[#allocation8 + $0xd0] sm:$0xff]
    %v501 = vld [vmem:[#allocation8 + $0xd8] sm:$0xff]
    %v502 = vld [vmem:[#allocation8 + $0xe0] sm:$0xff]
    %v503 = vld [vmem:[#allocation8 + $0xe8] sm:$0xff]
    %v504 = vld [vmem:[#allocation8 + $0xf0] sm:$0xff]
    %v505 = vld [vmem:[#allocation8 + $0xf8] sm:$0xff]
    %v506 = vld [vmem:[%s6] sm:$0x1]
    %v508 = vlaneseq
    %v509 = vshrl.u32 %v508, 7
    %v510 = vsub.s32 0, %v509
    %v511 = vrot.slane %v506, %v510
    %513 = vmatprep.subr.mxu0 0.0
    %514 = vmatpush1.msra.mxu0 %v474
    %515 = vmatprep.subr.mxu0 0.0
    %516 = vmatpush1.msra.mxu0 %v475
    %517 = vmatprep.subr.mxu0 0.0
    %518 = vmatpush1.msra.mxu0 %v476
    %519 = vmatprep.subr.mxu0 0.0
    %520 = vmatpush1.msra.mxu0 %v477
    %521 = vmatprep.subr.mxu0 0.0
    %522 = vmatpush1.msra.mxu0 %v478
    %523 = vmatprep.subr.mxu0 0.0
    %524 = vmatpush1.msra.mxu0 %v479
    %525 = vmatprep.subr.mxu0 0.0
    %526 = vmatpush1.msra.mxu0 %v480
    %527 = vmatprep.subr.mxu0 0.0
    %528 = vmatpush1.msra.mxu0 %v481
    %529 = vmatprep.subr.mxu0 0.0
    %530 = vmatpush1.msra.mxu0 %v482
    %531 = vmatprep.subr.mxu0 0.0
    %532 = vmatpush1.msra.mxu0 %v483
    %533 = vmatprep.subr.mxu0 0.0
    %534 = vmatpush1.msra.mxu0 %v484
    %535 = vmatprep.subr.mxu0 0.0
    %536 = vmatpush1.msra.mxu0 %v485
    %537 = vmatprep.subr.mxu0 0.0
    %538 = vmatpush1.msra.mxu0 %v486
    %539 = vmatprep.subr.mxu0 0.0
    %540 = vmatpush1.msra.mxu0 %v487
    %541 = vmatprep.subr.mxu0 0.0
    %542 = vmatpush1.msra.mxu0 %v488
    %543 = vmatprep.subr.mxu0 0.0
    %544 = vmatpush1.msra.mxu0 %v489
    %545 = vmatprep.subr.mxu0 0.0
    %546 = vmatpush1.msra.mxu0 %v490
    %547 = vmatprep.subr.mxu0 0.0
    %548 = vmatpush1.msra.mxu0 %v491
    %549 = vmatprep.subr.mxu0 0.0
    %550 = vmatpush1.msra.mxu0 %v492
    %551 = vmatprep.subr.mxu0 0.0
    %552 = vmatpush1.msra.mxu0 %v493
    %553 = vmatprep.subr.mxu0 0.0
    %554 = vmatpush1.msra.mxu0 %v494
    %555 = vmatprep.subr.mxu0 0.0
    %556 = vmatpush1.msra.mxu0 %v495
    %557 = vmatprep.subr.mxu0 0.0
    %558 = vmatpush1.msra.mxu0 %v496
    %559 = vmatprep.subr.mxu0 0.0
    %560 = vmatpush1.msra.mxu0 %v497
    %561 = vmatprep.subr.mxu0 0.0
    %562 = vmatpush1.msra.mxu0 %v498
    %563 = vmatprep.subr.mxu0 0.0
    %564 = vmatpush1.msra.mxu0 %v499
    %565 = vmatprep.subr.mxu0 0.0
    %566 = vmatpush1.msra.mxu0 %v500
    %567 = vmatprep.subr.mxu0 0.0
    %568 = vmatpush1.msra.mxu0 %v501
    %569 = vmatprep.subr.mxu0 0.0
    %570 = vmatpush1.msra.mxu0 %v502
    %571 = vmatprep.subr.mxu0 0.0
    %572 = vmatpush1.msra.mxu0 %v503
    %573 = vmatprep.subr.mxu0 0.0
    %574 = vmatpush1.msra.mxu0 %v504
    %575 = vmatprep.subr.mxu0 0.0
    %576 = vmatpush1.msra.mxu0 %v505
    %577 = vmatprep.mubr.f32.mxu0 %v87
    %578 = vmatmul.mubr.f32.gmra.mrb[0].mxu0 %v86
    %v579 = vpop.f32.mrb[0].mxu0
    %v580 = vadd.f32 %v511, %v579
    %v581 = vpop.f32.mrb[0].mxu0
    %582 = vmatprep.mubr.f32.mxu0 %v89
    %583 = vmatmul.mubr.f32.gmra.mrb[0].mxu0 %v88
    %v584 = vpop.f32.mrb[0].mxu0
    %v585 = vadd.f32 %v511, %v584
    %v586 = vpop.f32.mrb[0].mxu0
    %587 = vmatprep.mubr.f32.mxu0 %v91
    %588 = vmatmul.mubr.f32.gmra.mrb[0].mxu0 %v90
    %v589 = vpop.f32.mrb[0].mxu0
    %v590 = vadd.f32 %v511, %v589
    %v591 = vpop.f32.mrb[0].mxu0
    %592 = vmatprep.mubr.f32.mxu0 %v93
    %593 = vmatmul.mubr.f32.gmra.mrb[0].mxu0 %v92
    %v594 = vpop.f32.mrb[0].mxu0
    %v595 = vadd.f32 %v511, %v594
    %v596 = vpop.f32.mrb[0].mxu0
    %597 = vmatprep.mubr.f32.mxu0 %v95
    %598 = vmatmul.mubr.f32.gmra.mrb[0].mxu0 %v94
    %v599 = vpop.f32.mrb[0].mxu0
    %v600 = vadd.f32 %v511, %v599
    %v601 = vpop.f32.mrb[0].mxu0
    %602 = vmatprep.mubr.f32.mxu0 %v97
    %603 = vmatmul.mubr.f32.gmra.mrb[0].mxu0 %v96
    %v604 = vpop.f32.mrb[0].mxu0
    %v605 = vadd.f32 %v511, %v604
    %v606 = vpop.f32.mrb[0].mxu0
    %607 = vmatprep.mubr.f32.mxu0 %v99
    %608 = vmatmul.mubr.f32.gmra.mrb[0].mxu0 %v98
    %v609 = vpop.f32.mrb[0].mxu0
    %v610 = vadd.f32 %v511, %v609
    %v611 = vpop.f32.mrb[0].mxu0
    %612 = vmatprep.mubr.f32.mxu0 %v101
    %613 = vmatmul.mubr.f32.gmra.mrb[0].mxu0 %v100
    %v614 = vpop.f32.mrb[0].mxu0
    %v615 = vadd.f32 %v511, %v614
    %v616 = vpop.f32.mrb[0].mxu0
    %617 = vdwg.mxu0
    %618 = vst [vmem:[#allocation13] sm:$0xff] %v580
    %619 = vst [vmem:[#allocation13 + $0x8] sm:$0xff] %v585
    %620 = vst [vmem:[#allocation13 + $0x10] sm:$0xff] %v590
    %621 = vst [vmem:[#allocation13 + $0x18] sm:$0xff] %v595
    %622 = vst [vmem:[#allocation13 + $0x20] sm:$0xff] %v600
    %623 = vst [vmem:[#allocation13 + $0x28] sm:$0xff] %v605
    %624 = vst [vmem:[#allocation13 + $0x30] sm:$0xff] %v610
    %625 = vst [vmem:[#allocation13 + $0x38] sm:$0xff] %v615
    // Predicated region
    $region46: #{tpu_custom_call.1} parent=1 // pred_check
      _
    $region47: #{tpu_custom_call.1} parent=1 // pred_check_branch
      %627 = sbr.rel (0) target = $region49
    $region48: #{tpu_custom_call.1} parent=1 // pred_region
      %s629 = ssub.s32 128, 128
      %630 = vsyncadd [#allocation4], %s629
      %s632 = sshll.u32 [#allocation10], 4
      %s633 = int_to_ptr.vmem [resolvable:$true] %s632
      %635 = dma.vmem_to_hbm [thread:$0]  %s633, 128, %s7, [#allocation4]
    $region49: #{tpu_custom_call.1} parent=1 // pred_fallthru
      _
    // Predicated region
    $region50: #{tpu_custom_call.1} parent=1 // pred_check
      _
    $region51: #{tpu_custom_call.1} parent=1 // pred_check_branch
      %637 = sbr.rel (0) target = $region53
    $region52: #{tpu_custom_call.1} parent=1 // pred_region
      %s639 = ssub.s32 128, 128
      %640 = vsyncadd [#allocation12], %s639
      %s642 = sshll.u32 [#allocation11], 4
      %s643 = int_to_ptr.vmem [resolvable:$true] %s642
      %645 = dma.vmem_to_hbm [thread:$0]  %s643, 128, %s8, [#allocation12]
    $region53: #{tpu_custom_call.1} parent=1 // pred_fallthru
      _
    // Predicated region
    $region54: #{tpu_custom_call.1} parent=1 // pred_check
      _
    $region55: #{tpu_custom_call.1} parent=1 // pred_check_branch
      %647 = sbr.rel (0) target = $region57
    $region56: #{tpu_custom_call.1} parent=1 // pred_region
      %s649 = ssub.s32 1024, 1024
      %650 = vsyncadd [#allocation12], %s649
      %s651 = sshll.u32 [#allocation13], 4
      %s652 = int_to_ptr.vmem [resolvable:$true] %s651
      %657 = dma.vmem_to_hbm [thread:$0]  %s652, 1024, %s9, [#allocation12], 128, 128, 8
    $region57: #{tpu_custom_call.1} parent=1 // pred_fallthru
      _
    // Predicated region
    $region58: #{tpu_custom_call.1} parent=1 // pred_check
      _
    $region59: #{tpu_custom_call.1} parent=1 // pred_check_branch
      %659 = sbr.rel (0) target = $region61
    $region60: #{tpu_custom_call.1} parent=1 // pred_region
      %660 = dma.done [#allocation4], 128
    $region61: #{tpu_custom_call.1} parent=1 // pred_fallthru
      _
    // Predicated region
    $region62: #{tpu_custom_call.1} parent=1 // pred_check
      _
    $region63: #{tpu_custom_call.1} parent=1 // pred_check_branch
      %662 = sbr.rel (0) target = $region65
    $region64: #{tpu_custom_call.1} parent=1 // pred_region
      %663 = dma.done [#allocation12], 128
    $region65: #{tpu_custom_call.1} parent=1 // pred_fallthru
      _
    // Predicated region
    $region66: #{tpu_custom_call.1} parent=1 // pred_check
      _
    $region67: #{tpu_custom_call.1} parent=1 // pred_check_branch
      %665 = sbr.rel (0) target = $region69
    $region68: #{tpu_custom_call.1} parent=1 // pred_region
      %666 = dma.done [#allocation12], 1024
    $region69: #{tpu_custom_call.1} parent=1 // pred_fallthru
      _
    %667 = vsyncpa [#allocation3], 1
    %668 = vsyncpa [#allocation6], 1
    %669 = vsyncpa [#allocation9], 1
    %670 = vsyncpa [#allocation4], 1
    %671 = vsyncpa [#allocation12], 1

</llo_original>
